<compile_context>
chip_gen: v5e
topology: v5e:2x2
jax: 0.10.0
libtpu: 0.0.40
codegen_flags: <defaults>
</compile_context>

<pallas_src>
import functools

import jax
import jax.numpy as jnp
from jax.experimental import pallas as pl
from jax.experimental.pallas import tpu as pltpu


def _round_up(x: int, m: int) -> int:
    return ((x + m - 1) // m) * m


def _layernorm_kernel(x_ref, gamma_ref, beta_ref, o_ref, *, epsilon: float, features: int):
    x = x_ref[...].astype(jnp.float32)          # (tile_rows, features)
    gamma = gamma_ref[...].astype(jnp.float32)  # (1, features)
    beta = beta_ref[...].astype(jnp.float32)    # (1, features)

    # mean over the feature axis (XLU reduction)
    mean = jnp.mean(x, axis=-1, keepdims=True)
    centered = x - mean

    # unbiased variance (Bessel's correction, divisor N-1), matching torch.std default
    var_unbiased = jnp.sum(centered * centered, axis=-1, keepdims=True) * jnp.float32(
        1.0 / (features - 1)
    )
    st_dev = jnp.sqrt(var_unbiased)

    # eps is added to the std (not the variance) to match the PyTorch module.
    denom = st_dev + jnp.float32(epsilon)
    # Per-row reciprocal on the EUP instead of a tile-wide VALU divide.
    inv = pl.reciprocal(denom, approx=True)
    # One Newton-Raphson step on the (tile_rows, 1) scalar-per-row value restores
    # near-exact 1/denom accuracy (error ~1e-7 rel) at negligible cost.
    inv = inv * (jnp.float32(2.0) - denom * inv)

    o_ref[...] = (centered * inv * gamma + beta).astype(o_ref.dtype)


def _vmem_capacity_bytes() -> int:
    """Detected per-core VMEM capacity; conservative (v7x) fallback."""
    try:
        return int(pltpu.get_tpu_info().vmem_capacity_bytes)
    except Exception:
        return 64 * 1024 * 1024  # v7x has the smallest VMEM; safe everywhere.


def _choose_tile_rows(rows: int, d_model: int, itemsize: int, vmem_cap: int) -> int:
    """Largest row tile that fits comfortably in VMEM, balanced across the grid."""
    # Resident bytes per row (rough): double-buffered input + output tiles in the
    # input dtype, plus ~3 f32 intermediates (x, centered, out) held by the body.
    per_row_bytes = d_model * (2 * itemsize + 2 * itemsize + 3 * 4)
    budget = vmem_cap // 2  # leave headroom for compiler scratch / regalloc
    tile = max(8, budget // max(per_row_bytes, 1))
    tile = min(tile, 1024)                 # diminishing returns beyond ~1024 rows
    tile = min(tile, _round_up(rows, 8))   # never bigger than the (padded) problem
    tile = max(8, (tile // 8) * 8)         # sublane alignment
    # Balance tiles across the grid (also keeps grid >= 2 for v7x megacore when
    # there are enough rows) and minimizes padding waste.
    num_tiles = -(-rows // tile)
    tile = max(8, _round_up(-(-rows // num_tiles), 8))
    return tile


def layer_normalization(x, gamma, beta, epsilon: float = 1e-5, *, tile_rows: int | None = None):
    """x: (batch, seq_len, d_model); gamma, beta: (d_model,)."""
    batch, seq_len, d_model = x.shape
    rows = batch * seq_len
    assert d_model > 1, "unbiased std needs at least 2 features"
    # NOTE: best HBM/VMEM utilization when d_model is a multiple of 128 (lane-dense
    # loads/stores); other sizes are correct but waste lanes.

    vmem_cap = _vmem_capacity_bytes()
    if tile_rows is None:
        tile_rows = _choose_tile_rows(rows, d_model, jnp.dtype(x.dtype).itemsize, vmem_cap)
    tile_rows = max(8, (tile_rows // 8) * 8)

    num_tiles = -(-rows // tile_rows)
    padded_rows = num_tiles * tile_rows

    x2d = x.reshape(rows, d_model)
    if padded_rows != rows:
        # Zero-pad the trailing rows; each row is normalized independently so the
        # padded rows never affect valid output (and are sliced off below).
        x2d = jnp.pad(x2d, ((0, padded_rows - rows), (0, 0)))
    gamma2d = gamma.reshape(1, d_model)
    beta2d = beta.reshape(1, d_model)

    kernel = functools.partial(_layernorm_kernel, epsilon=float(epsilon), features=d_model)

    out2d = pl.pallas_call(
        kernel,
        out_shape=jax.ShapeDtypeStruct((padded_rows, d_model), x.dtype),
        grid_spec=pltpu.PrefetchScalarGridSpec(
            num_scalar_prefetch=0,
            grid=(num_tiles,),
            in_specs=[
                pl.BlockSpec((tile_rows, d_model), lambda i: (i, 0)),
                pl.BlockSpec((1, d_model), lambda i: (0, 0)),
                pl.BlockSpec((1, d_model), lambda i: (0, 0)),
            ],
            out_specs=pl.BlockSpec((tile_rows, d_model), lambda i: (i, 0)),
        ),
        compiler_params=pltpu.CompilerParams(
            dimension_semantics=("parallel",),
            vmem_limit_bytes=int(vmem_cap * 0.75),
        ),
    )(x2d, gamma2d, beta2d)

    if padded_rows != rows:
        out2d = out2d[:rows]
    return out2d.reshape(batch, seq_len, d_model)


def _reference(x, gamma, beta, epsilon=1e-5):
    x32 = x.astype(jnp.float32)
    mean = jnp.mean(x32, axis=-1, keepdims=True)
    st_dev = jnp.std(x32, axis=-1, keepdims=True, ddof=1)  # unbiased, matches torch.std
    return (gamma * (x32 - mean) / (st_dev + epsilon) + beta).astype(x.dtype)


if __name__ == "__main__":
    key = jax.random.PRNGKey(0)

    # Test 1: lane-dense feature dim (d_model multiple of 128), default module init.
    batch, seq_len, d_model = 2, 8, 128
    k1, k2, k3 = jax.random.split(key, 3)
    x = jax.random.normal(k1, (batch, seq_len, d_model), dtype=jnp.float32)
    gamma = jnp.ones((d_model,), dtype=jnp.float32)   # nn.Parameter(torch.ones(features))
    beta = jnp.zeros((d_model,), dtype=jnp.float32)   # nn.Parameter(torch.zeros(features))

    out = jax.block_until_ready(layer_normalization(x, gamma, beta, epsilon=1e-5))
    ref = _reference(x, gamma, beta, epsilon=1e-5)
    assert out.shape == (batch, seq_len, d_model)
    assert jnp.allclose(out, ref, atol=1e-5, rtol=1e-5), "mismatch vs reference (test 1)"

    # Test 2: non-trivial gamma/beta and rows not divisible by the tile (pads internally).
    b2, s2 = 3, 5  # rows = 15
    x2 = jax.random.normal(k2, (b2, s2, d_model), dtype=jnp.float32) * 3.0 + 1.5
    g2 = jax.random.normal(k3, (d_model,), dtype=jnp.float32)
    be2 = jnp.linspace(-1.0, 1.0, d_model, dtype=jnp.float32)

    out2 = jax.block_until_ready(layer_normalization(x2, g2, be2, epsilon=1e-5))
    ref2 = _reference(x2, g2, be2, epsilon=1e-5)
    assert out2.shape == (b2, s2, d_model)
    assert jnp.allclose(out2, ref2, atol=1e-5, rtol=1e-5), "mismatch vs reference (test 2)"

    print("KERNEL_OK")
</pallas_src>

<mosaic_0001>
module attributes {stable_mosaic.version = 11 : i64} {
  func.func @_layernorm_kernel(%arg0: i32, %arg1: memref<16x128xf32, #tpu.memory_space<vmem>>, %arg2: memref<1x128xf32, #tpu.memory_space<vmem>>, %arg3: memref<1x128xf32, #tpu.memory_space<vmem>>, %arg4: memref<16x128xf32, #tpu.memory_space<vmem>>) attributes {dimension_semantics = [#tpu.dimension_semantics<parallel>], iteration_bounds = array<i64: 1>, scalar_prefetch = 0 : i64, scratch_operands = 0 : i64, tpu.core_type = #tpu.core_type<tc>, window_params = [{transform_indices = @transform_0, window_bounds = array<i64: 16, 128>}, {pipeline_mode = #tpu.pipeline_mode<synchronous>, transform_indices = @transform_1, window_bounds = array<i64: 1, 128>}, {pipeline_mode = #tpu.pipeline_mode<synchronous>, transform_indices = @transform_2, window_bounds = array<i64: 1, 128>}, {transform_indices = @transform_3, window_bounds = array<i64: 16, 128>}]} {
    %c0 = arith.constant 0 : index
    %c0_0 = arith.constant 0 : index
    %0 = vector.load %arg1[%c0, %c0_0] : memref<16x128xf32, #tpu.memory_space<vmem>>, vector<16x128xf32>
    %c0_1 = arith.constant 0 : index
    %c0_2 = arith.constant 0 : index
    %1 = vector.load %arg2[%c0_1, %c0_2] : memref<1x128xf32, #tpu.memory_space<vmem>>, vector<1x128xf32>
    %c0_3 = arith.constant 0 : index
    %c0_4 = arith.constant 0 : index
    %2 = vector.load %arg3[%c0_3, %c0_4] : memref<1x128xf32, #tpu.memory_space<vmem>>, vector<1x128xf32>
    %cst = arith.constant dense<0.000000e+00> : vector<16xf32>
    %3 = vector.multi_reduction <add>, %0, %cst [1] : vector<16x128xf32> to vector<16xf32>
    %4 = vector.shape_cast %3 : vector<16xf32> to vector<16x1xf32>
    %cst_5 = arith.constant 1.280000e+02 : f32
    %5 = vector.broadcast %cst_5 : f32 to vector<16x1xf32>
    %6 = arith.divf %4, %5 : vector<16x1xf32>
    %7 = vector.broadcast %6 : vector<16x1xf32> to vector<16x128xf32>
    %8 = arith.subf %0, %7 : vector<16x128xf32>
    %9 = arith.mulf %8, %8 : vector<16x128xf32>
    %cst_6 = arith.constant dense<0.000000e+00> : vector<16xf32>
    %10 = vector.multi_reduction <add>, %9, %cst_6 [1] : vector<16x128xf32> to vector<16xf32>
    %11 = vector.shape_cast %10 : vector<16xf32> to vector<16x1xf32>
    %cst_7 = arith.constant 0.00787401571 : f32
    %12 = vector.broadcast %cst_7 : f32 to vector<16x1xf32>
    %13 = arith.mulf %11, %12 : vector<16x1xf32>
    %14 = math.sqrt %13 : vector<16x1xf32>
    %cst_8 = arith.constant 9.99999974E-6 : f32
    %15 = vector.broadcast %cst_8 : f32 to vector<16x1xf32>
    %16 = arith.addf %14, %15 : vector<16x1xf32>
    %17 = tpu.reciprocal %16 {approx = true} : vector<16x1xf32> -> vector<16x1xf32>
    %18 = arith.mulf %16, %17 : vector<16x1xf32>
    %cst_9 = arith.constant 2.000000e+00 : f32
    %19 = vector.broadcast %cst_9 : f32 to vector<16x1xf32>
    %20 = arith.subf %19, %18 : vector<16x1xf32>
    %21 = arith.mulf %17, %20 : vector<16x1xf32>
    %22 = vector.broadcast %21 : vector<16x1xf32> to vector<16x128xf32>
    %23 = arith.mulf %8, %22 : vector<16x128xf32>
    %24 = vector.broadcast %1 : vector<1x128xf32> to vector<16x128xf32>
    %25 = arith.mulf %23, %24 : vector<16x128xf32>
    %26 = vector.broadcast %2 : vector<1x128xf32> to vector<16x128xf32>
    %27 = arith.addf %25, %26 : vector<16x128xf32>
    %c0_10 = arith.constant 0 : index
    %c0_11 = arith.constant 0 : index
    %28 = vector.load %arg4[%c0_10, %c0_11] : memref<16x128xf32, #tpu.memory_space<vmem>>, vector<16x128xf32>
    tpu.vector_store %arg4[%c0_10, %c0_11], %27 {strides = array<i32>} : memref<16x128xf32, #tpu.memory_space<vmem>>, vector<16x128xf32>,
    return
  }
  func.func @transform_0(%arg0: i32) -> (i32, i32) {
    %c0_i32 = arith.constant 0 : i32
    %c0_i32_0 = arith.constant 0 : i32
    return %arg0, %c0_i32 : i32, i32
  }
  func.func @transform_1(%arg0: i32) -> (i32, i32) {
    %c0_i32 = arith.constant 0 : i32
    %c0_i32_0 = arith.constant 0 : i32
    %c0_i32_1 = arith.constant 0 : i32
    return %c0_i32, %c0_i32_0 : i32, i32
  }
  func.func @transform_2(%arg0: i32) -> (i32, i32) {
    %c0_i32 = arith.constant 0 : i32
    %c0_i32_0 = arith.constant 0 : i32
    %c0_i32_1 = arith.constant 0 : i32
    return %c0_i32, %c0_i32_0 : i32, i32
  }
  func.func @transform_3(%arg0: i32) -> (i32, i32) {
    %c0_i32 = arith.constant 0 : i32
    %c0_i32_0 = arith.constant 0 : i32
    return %arg0, %c0_i32 : i32, i32
  }
}

</mosaic_0001>

<llo_original>
// kernel: tpu_custom_call.1
$region0: #{tpu_custom_call.1}
  #allocation0 [shape = 'u32[]', space=smem, size = 0x4, offset = 0x4, fixed_abs, tag = 'smem constant byte address 0x4 - core index']
  #allocation1 [shape = 'u32[72,128]{1,0:T(1,128)}', space=vmem, size = 0x9000, scoped, tag = 'internal scratch']
  %s0 = inlined_call_operand.hbm [shape: f32[16,128], index: 0, kind: input, shape index: {}]
  %s1 = inlined_call_operand.hbm [shape: f32[1,128], index: 1, kind: input, shape index: {}]
  %s2 = inlined_call_operand.vmem [shape: f32[1,128], index: 2, kind: input, shape index: {}]
  %s3 = inlined_call_operand.hbm [shape: f32[16,128], index: 3, kind: output, shape index: {}]
  %s4 = sld [smem:[#allocation0]]
  $region30: #{tpu_custom_call.1} parent=0
    _
  %s6 = ssub.s32 1, %s4
  %s7 = scalar_select 0, %s6, %s4
  $region1: #{tpu_custom_call.1} parent=0
    #allocation2 [shape = 'u8[8192]{0}', space=vmem, size = 0x2000, scoped, tag = 'input window, operand 0, single buffered']
    #allocation3 [shape = 's32[1]{0}', space=sflag, size = 0x4, scoped, tag = 'scoped memory for tpu_custom_call.1']
    #allocation4 [shape = 's32[1]{0}', space=sflag, size = 0x4, scoped, tag = 'scoped memory for tpu_custom_call.1']
    #allocation5 [shape = 'u8[512]{0}', space=vmem, size = 0x400, scoped, tag = 'input window, operand 1, single buffered']
    #allocation6 [shape = 's32[1]{0}', space=sflag, size = 0x4, scoped, tag = 'scoped memory for tpu_custom_call.1']
    #allocation7 [shape = 'u8[8192]{0}', space=vmem, size = 0x2000, scoped, tag = 'output window, operand 0, single buffered']
    %8 = vsyncpa [#allocation3], 0
    %9 = vsyncpa [#allocation6], 0
    %10 = vsyncpa [#allocation4], 0
    // Predicated region
    $region2: #{tpu_custom_call.1} parent=1 // pred_check
      _
    $region3: #{tpu_custom_call.1} parent=1 // pred_check_branch
      %12 = sbr.rel (0) target = $region5
    $region4: #{tpu_custom_call.1} parent=1 // pred_region
      %14 = vsyncadd [#allocation3], 0
      %s15 = sshll.u32 %s0, 4
      %s16 = int_to_ptr.hbm [resolvable:$true] %s15
      %s17 = sshll.u32 [#allocation2], 4
      %s18 = int_to_ptr.vmem [resolvable:$true] %s17
      %23 = dma.hbm_to_vmem [thread:$0]  %s16, 256, %s18, [#allocation3], 128, 128, 8
    $region5: #{tpu_custom_call.1} parent=1 // pred_fallthru
      _
    // Predicated region
    $region6: #{tpu_custom_call.1} parent=1 // pred_check
      _
    $region7: #{tpu_custom_call.1} parent=1 // pred_check_branch
      %25 = sbr.rel (0) target = $region9
    $region8: #{tpu_custom_call.1} parent=1 // pred_region
      %27 = vsyncadd [#allocation6], 0
      %s29 = sshll.u32 %s1, 4
      %s30 = int_to_ptr.hbm [resolvable:$true] %s29
      %s31 = sshll.u32 [#allocation5], 4
      %s32 = int_to_ptr.vmem [resolvable:$true] %s31
      %34 = dma.hbm_to_vmem [thread:$0]  %s30, 16, %s32, [#allocation6]
    $region9: #{tpu_custom_call.1} parent=1 // pred_fallthru
      _
    // Predicated region
    $region10: #{tpu_custom_call.1} parent=1 // pred_check
      _
    $region11: #{tpu_custom_call.1} parent=1 // pred_check_branch
      %36 = sbr.rel (0) target = $region13
    $region12: #{tpu_custom_call.1} parent=1 // pred_region
      _
    $region13: #{tpu_custom_call.1} parent=1 // pred_fallthru
      _
    // Predicated region
    $region14: #{tpu_custom_call.1} parent=1 // pred_check
      _
    $region15: #{tpu_custom_call.1} parent=1 // pred_check_branch
      %38 = sbr.rel (0) target = $region17
    $region16: #{tpu_custom_call.1} parent=1 // pred_region
      %40 = dma.done [#allocation3], 256
    $region17: #{tpu_custom_call.1} parent=1 // pred_fallthru
      _
    // Predicated region
    $region18: #{tpu_custom_call.1} parent=1 // pred_check
      _
    $region19: #{tpu_custom_call.1} parent=1 // pred_check_branch
      %42 = sbr.rel (0) target = $region21
    $region20: #{tpu_custom_call.1} parent=1 // pred_region
      %44 = dma.done [#allocation6], 16
    $region21: #{tpu_custom_call.1} parent=1 // pred_fallthru
      _
    %v45 = vld [vmem:[#allocation2] sm:$0xff]
    %v46 = vld [vmem:[#allocation2 + $0x8] sm:$0xff]
    %v47 = vld [vmem:[#allocation5] sm:$0x1]
    %v48 = vld [vmem:[%s2] sm:$0x1]
    %49 = vadd.xlane.f32.xlu0 %v45
    %v50 = vpop.xlane.xlu0 %49
    %51 = vadd.xlane.f32.xlu0 %v46
    %v52 = vpop.xlane.xlu0 %51
    %v53 = vrcp.pop 128.0
    %v54 = vmul.f32 128.0, %v53
    %v55 = vsub.f32 1.0, %v54
    %v56 = vmul.f32 %v53, %v55
    %v57 = vadd.f32 %v53, %v56
    %vm58 = vweird.f32 %v53
    %v59 = vsel %vm58, %v53, %v57
    %v60 = vmul.f32 %v50, %v59
    %v61 = vmul.f32 %v52, %v59
    %v62 = vsub.f32 %v45, %v60
    %v63 = vsub.f32 %v46, %v61
    %v64 = vmul.f32 %v62, %v62
    %v65 = vmul.f32 %v63, %v63
    %66 = vadd.xlane.f32.xlu0 %v64
    %v67 = vpop.xlane.xlu0 %66
    %68 = vadd.xlane.f32.xlu0 %v65
    %v69 = vpop.xlane.xlu0 %68
    %v70 = vmul.f32 %v67, 0.007874016
    %v71 = vmul.f32 %v69, 0.007874016
    %v72 = vrsqrt.pop %v70
    %v73 = vmul.f32 %v72, %v70
    %v74 = vmul.f32 %v73, %v72
    %v75 = vmul.f32 0.5, %v74
    %v76 = vsub.f32 1.5, %v75
    %v77 = vmul.f32 %v72, %v76
    %v78 = vmul.f32 %v70, %v77
    %vm79 = vcmp.eq.f32.partialorder %v70, inf
    %v80 = vsel %vm79, %v70, %v78
    %vm81 = vcmp.eq.f32.partialorder %v70, 0.0
    %v82 = vand.u32 %v70, 2147483648
    %v83 = vsel %vm81, %v82, %v80
    %v84 = vrsqrt.pop %v71
    %v85 = vmul.f32 %v84, %v71
    %v86 = vmul.f32 %v85, %v84
    %v87 = vmul.f32 0.5, %v86
    %v88 = vsub.f32 1.5, %v87
    %v89 = vmul.f32 %v84, %v88
    %v90 = vmul.f32 %v71, %v89
    %vm91 = vcmp.eq.f32.partialorder %v71, inf
    %v92 = vsel %vm91, %v71, %v90
    %vm93 = vcmp.eq.f32.partialorder %v71, 0.0
    %v94 = vand.u32 %v71, 2147483648
    %v95 = vsel %vm93, %v94, %v92
    %v96 = vadd.f32 %v83, 1e-05
    %v97 = vadd.f32 %v95, 1e-05
    %v98 = vrcp.pop %v96
    %v99 = vrcp.pop %v97
    %v100 = vmul.f32 %v96, %v98
    %v101 = vmul.f32 %v97, %v99
    %v102 = vsub.f32 2.0, %v100
    %v103 = vsub.f32 2.0, %v101
    %v104 = vmul.f32 %v98, %v102
    %v105 = vmul.f32 %v99, %v103
    %v106 = vmul.f32 %v62, %v104
    %v107 = vmul.f32 %v63, %v105
    %v109 = vperm.slane %v47, 0
    %v111 = vmul.f32 %v106, %v109
    %v112 = vmul.f32 %v107, %v109
    %v114 = vperm.slane %v48, 0
    %v116 = vadd.f32 %v111, %v114
    %v117 = vadd.f32 %v112, %v114
    %118 = vst [vmem:[#allocation7] sm:$0xff] %v116
    %119 = vst [vmem:[#allocation7 + $0x8] sm:$0xff] %v117
    // Predicated region
    $region22: #{tpu_custom_call.1} parent=1 // pred_check
      _
    $region23: #{tpu_custom_call.1} parent=1 // pred_check_branch
      %121 = sbr.rel (0) target = $region25
    $region24: #{tpu_custom_call.1} parent=1 // pred_region
      %123 = vsyncadd [#allocation4], 0
      %s124 = sshll.u32 [#allocation7], 4
      %s125 = int_to_ptr.vmem [resolvable:$true] %s124
      %s126 = sshll.u32 %s3, 4
      %s127 = int_to_ptr.hbm [resolvable:$true] %s126
      %132 = dma.vmem_to_hbm [thread:$0]  %s125, 256, %s127, [#allocation4], 128, 128, 8
    $region25: #{tpu_custom_call.1} parent=1 // pred_fallthru
      _
    // Predicated region
    $region26: #{tpu_custom_call.1} parent=1 // pred_check
      _
    $region27: #{tpu_custom_call.1} parent=1 // pred_check_branch
      %134 = sbr.rel (0) target = $region29
    $region28: #{tpu_custom_call.1} parent=1 // pred_region
      %136 = dma.done [#allocation4], 256
    $region29: #{tpu_custom_call.1} parent=1 // pred_fallthru
      _
    %137 = vsyncpa [#allocation3], 1
    %138 = vsyncpa [#allocation6], 1
    %139 = vsyncpa [#allocation4], 1

</llo_original>
